<compile_context>
chip_gen: v7x
topology: tpu7x:2x2x1
jax: 0.10.0
libtpu: 0.0.40
codegen_flags: <defaults>
</compile_context>

<pallas_src>
import jax
import jax.numpy as jnp
import numpy as np
from jax.experimental import pallas as pl
from jax.experimental.pallas import tpu as pltpu


def _round_up(x, m):
    return (x + m - 1) // m * m


def nonlinear_seq_attn_kernel(len_ref, x_ref, w1_ref, b1_ref, w2_ref, b2_ref, out_ref):
    """One grid step processes TB batch rows.

    len_ref: SMEM (B_pad,) int32      number of valid (unmasked) tokens per row
    x_ref:   VMEM (TB, L_pad, D_pad)  bf16
    w1_ref:  VMEM (D_pad, H_pad)      bf16
    b1_ref:  VMEM (1, H_pad)          f32
    w2_ref:  VMEM (1, H_pad)          f32
    b2_ref:  VMEM (1, 1)              f32
    out_ref: VMEM (1, TB, L_pad)      f32
    """
    tb, l_pad, d_pad = x_ref.shape
    h_pad = w1_ref.shape[1]

    # ---- FFN hidden layer: one big MXU matmul over all TB*L_pad token rows. ----
    x2d = x_ref[...].reshape(tb * l_pad, d_pad)                         # free leading-dim merge
    h = jnp.dot(x2d, w1_ref[...], preferred_element_type=jnp.float32)   # (TB*L, H) f32 acc
    h = jnp.maximum(h + b1_ref[...], 0.0)

    # ---- Second linear (H -> 1). Kept as VPU multiply + lane reduce: an MXU
    # matvec would produce a (TB*L, 1) column needing a sublane->lane relayout to
    # reach the lane-dense (TB, L_pad) layout the softmax/output needs, while this
    # form lands there directly and is D_pad x smaller than the main matmul.
    # TODO(synk): revisit MXU matvec + relayout if this ever shows up in profiles.
    h3 = h.reshape(tb, l_pad, h_pad)                                     # free leading-dim split
    scores = jnp.sum(h3 * w2_ref[...][None, :, :], axis=-1)             # (TB, L_pad)
    scores = scores + b2_ref[...]                                        # (1,1) broadcast

    # ---- masked_fill from scalar-prefetched lengths (no mask DMA). ----
    neg = jnp.float32(jnp.finfo(jnp.float32).min)  # large finite: all-masked rows stay NaN-free
    col = jax.lax.broadcasted_iota(jnp.int32, (tb, l_pad), 1)
    row = jax.lax.broadcasted_iota(jnp.int32, (tb, l_pad), 0)
    b0 = pl.program_id(0) * tb
    nvalid = jnp.zeros((tb, l_pad), jnp.int32)
    for r in range(tb):                               # tb is a small static constant
        nvalid = jnp.where(row == r, len_ref[b0 + r], nvalid)
    scores = jnp.where(col < nvalid, scores, neg)

    # ---- numerically stable softmax over the (lane) sequence axis. ----
    m = jnp.max(scores, axis=-1, keepdims=True)
    e = jnp.exp(scores - m)                           # masked lanes underflow to exactly 0
    s = jnp.sum(e, axis=-1, keepdims=True)
    alpha = e * pl.reciprocal(s, approx=False)        # EUP reciprocal, no VALU divide

    out_ref[0] = alpha.astype(out_ref.dtype)


def nonlinear_seq_attn(x, x_mask, w1, b1, w2, b2, *, block_b=None):
    """x: (B, L, D) f32; x_mask: (B, L), truthy => padding (trailing padding assumed,
    as in canonical DrQA usage). Returns alpha: (B, L) f32."""
    B, L, D = x.shape
    H = w1.shape[1]

    L_pad = _round_up(L, 128)   # lane dim of the output block
    D_pad = _round_up(D, 128)   # MXU K dim
    H_pad = _round_up(H, 128)   # MXU N dim

    if block_b is None:
        block_b = max(1, 256 // L_pad)                # target >=256 rows in the flattened matmul
        if B >= 2:
            block_b = min(block_b, max(1, B // 2))    # keep >=2 grid steps (v7x has 2 TCs)
        block_b = max(1, min(block_b, B))
    nb = -(-B // block_b)
    B_pad = nb * block_b

    # Per-row valid length derived from the padding mask.
    mask_b = jnp.asarray(x_mask)
    if mask_b.dtype != jnp.bool_:
        mask_b = mask_b > 0.5
    lengths = (L - jnp.sum(mask_b, axis=-1)).astype(jnp.int32)           # (B,)
    lengths_p = jnp.zeros((B_pad,), jnp.int32).at[:B].set(lengths)       # pad rows -> length 0

    # Wrapper-side zero-padding + bf16 cast (pure layout plumbing; pads contribute 0).
    x_p = jnp.zeros((B_pad, L_pad, D_pad), jnp.bfloat16).at[:B, :L, :D].set(
        x.astype(jnp.bfloat16))
    w1_p = jnp.zeros((D_pad, H_pad), jnp.bfloat16).at[:D, :H].set(w1.astype(jnp.bfloat16))
    b1_p = jnp.zeros((1, H_pad), jnp.float32).at[:, :H].set(b1.astype(jnp.float32))
    w2_p = jnp.zeros((1, H_pad), jnp.float32).at[:, :H].set(w2.astype(jnp.float32))
    b2_p = b2.astype(jnp.float32).reshape(1, 1)

    # VMEM budget: double-buffered inputs/output + f32 hidden intermediate + slack.
    x_blk = block_b * L_pad * D_pad * 2
    out_blk = block_b * L_pad * 4
    wgt = D_pad * H_pad * 2 + 2 * H_pad * 4 + 4
    hid = block_b * L_pad * H_pad * 4
    vmem_limit = int(min(max(2 * (x_blk + out_blk + wgt) + 2 * hid + (2 << 20), 16 << 20),
                         96 << 20))

    out = pl.pallas_call(
        nonlinear_seq_attn_kernel,
        out_shape=jax.ShapeDtypeStruct((nb, block_b, L_pad), jnp.float32),
        grid_spec=pltpu.PrefetchScalarGridSpec(
            num_scalar_prefetch=1,                      # lengths -> SMEM
            grid=(nb,),
            in_specs=[
                pl.BlockSpec((block_b, L_pad, D_pad), lambda i, lens: (i, 0, 0)),  # x
                pl.BlockSpec((D_pad, H_pad), lambda i, lens: (0, 0)),              # w1
                pl.BlockSpec((1, H_pad), lambda i, lens: (0, 0)),                  # b1
                pl.BlockSpec((1, H_pad), lambda i, lens: (0, 0)),                  # w2
                pl.BlockSpec((1, 1), lambda i, lens: (0, 0)),                      # b2
            ],
            out_specs=pl.BlockSpec((1, block_b, L_pad), lambda i, lens: (i, 0, 0)),
        ),
        compiler_params=pltpu.CompilerParams(
            dimension_semantics=("parallel",),
            vmem_limit_bytes=vmem_limit,
        ),
    )(lengths_p, x_p, w1_p, b1_p, w2_p, b2_p)

    return out.reshape(B_pad, L_pad)[:B, :L]


def ref_forward(x, x_mask_bool, w1, b1, w2, b2):
    """Pure-JAX reference mirroring the PyTorch forward."""
    h = jnp.maximum(x @ w1 + b1, 0.0)                      # (B, L, H)
    scores = jnp.squeeze(h @ w2.T, -1) + b2[0, 0]          # (B, L)
    scores = jnp.where(x_mask_bool, -jnp.inf, scores)
    return jax.nn.softmax(scores, axis=-1)


if __name__ == "__main__":
    B, L, D, H = 4, 8, 32, 32
    key = jax.random.PRNGKey(0)
    kx, k1, k2, k3, k4 = jax.random.split(key, 5)

    x = jax.random.normal(kx, (B, L, D), dtype=jnp.float32)
    lengths_true = jnp.array([6, 5, 8, 3], dtype=jnp.int32)
    x_mask_bool = jnp.arange(L)[None, :] >= lengths_true[:, None]   # (B, L), True => pad

    # Deterministic synthetic parameters (torch: Linear(D,H) then Linear(H,1)).
    w1 = 0.1 * jax.random.normal(k1, (D, H), dtype=jnp.float32)
    b1 = 0.1 * jax.random.normal(k2, (1, H), dtype=jnp.float32)
    w2 = 0.1 * jax.random.normal(k3, (1, H), dtype=jnp.float32)
    b2 = 0.1 * jax.random.normal(k4, (1, 1), dtype=jnp.float32)

    alpha = nonlinear_seq_attn(x, x_mask_bool, w1, b1, w2, b2)
    alpha = jax.block_until_ready(alpha)
    alpha_np = np.asarray(alpha)

    # Apples-to-apples reference: same bf16-rounded MXU operands, f32 accumulation.
    x_r = x.astype(jnp.bfloat16).astype(jnp.float32)
    w1_r = w1.astype(jnp.bfloat16).astype(jnp.float32)
    ref_bf16 = np.asarray(ref_forward(x_r, x_mask_bool, w1_r, b1, w2, b2))
    # Pure-f32 PyTorch-parity reference; looser tol covers the bf16 operand cast.
    ref_f32 = np.asarray(ref_forward(x, x_mask_bool, w1, b1, w2, b2))

    assert alpha.shape == (B, L)
    assert np.allclose(alpha_np, ref_bf16, atol=1e-4), float(np.max(np.abs(alpha_np - ref_bf16)))
    assert np.allclose(alpha_np, ref_f32, atol=2e-2)
    assert np.allclose(alpha_np.sum(-1), 1.0, atol=1e-5)
    # masked positions must get exactly zero attention
    assert np.all(alpha_np[np.asarray(x_mask_bool)] == 0.0)

    print("KERNEL_OK")
</pallas_src>

<mosaic_0001>
module attributes {stable_mosaic.version = 11 : i64} {
  func.func @nonlinear_seq_attn_kernel(%arg0: i32, %arg1: memref<4xi32, #tpu.memory_space<smem>>, %arg2: memref<2x128x128xbf16, #tpu.memory_space<vmem>>, %arg3: memref<128x128xbf16, #tpu.memory_space<vmem>>, %arg4: memref<1x128xf32, #tpu.memory_space<vmem>>, %arg5: memref<1x128xf32, #tpu.memory_space<vmem>>, %arg6: memref<1x1xf32, #tpu.memory_space<vmem>>, %arg7: memref<1x2x128xf32, #tpu.memory_space<vmem>>) attributes {dimension_semantics = [#tpu.dimension_semantics<parallel>], iteration_bounds = array<i64: 2>, scalar_prefetch = 1 : i64, scratch_operands = 0 : i64, tpu.core_type = #tpu.core_type<tc>, window_params = [{transform_indices = @transform_0, window_bounds = array<i64: 2, 128, 128>}, {pipeline_mode = #tpu.pipeline_mode<synchronous>, transform_indices = @transform_1, window_bounds = array<i64: 128, 128>}, {pipeline_mode = #tpu.pipeline_mode<synchronous>, transform_indices = @transform_2, window_bounds = array<i64: 1, 128>}, {pipeline_mode = #tpu.pipeline_mode<synchronous>, transform_indices = @transform_3, window_bounds = array<i64: 1, 128>}, {pipeline_mode = #tpu.pipeline_mode<synchronous>, transform_indices = @transform_4, window_bounds = array<i64: 1, 1>}, {transform_indices = @transform_5, window_bounds = array<i64: 1, 2, 128>}]} {
    %c0 = arith.constant 0 : index
    %c0_0 = arith.constant 0 : index
    %c0_1 = arith.constant 0 : index
    %0 = vector.load %arg2[%c0, %c0_0, %c0_1] : memref<2x128x128xbf16, #tpu.memory_space<vmem>>, vector<2x128x128xbf16>
    %1 = vector.shape_cast %0 : vector<2x128x128xbf16> to vector<256x128xbf16>
    %c0_2 = arith.constant 0 : index
    %c0_3 = arith.constant 0 : index
    %2 = vector.load %arg3[%c0_2, %c0_3] : memref<128x128xbf16, #tpu.memory_space<vmem>>, vector<128x128xbf16>
    %cst = arith.constant dense<0.000000e+00> : vector<256x128xf32>
    %3 = tpu.matmul %1, %2, %cst {dimension_numbers = #tpu.dot_dimension_numbers<[1], [0], [0], [1], [0, 0, 1, 1], [], []>} : vector<256x128xbf16>, vector<128x128xbf16>, vector<256x128xf32> -> vector<256x128xf32>
    %c0_4 = arith.constant 0 : index
    %c0_5 = arith.constant 0 : index
    %4 = vector.load %arg4[%c0_4, %c0_5] : memref<1x128xf32, #tpu.memory_space<vmem>>, vector<1x128xf32>
    %5 = vector.broadcast %4 : vector<1x128xf32> to vector<256x128xf32>
    %6 = arith.addf %3, %5 : vector<256x128xf32>
    %cst_6 = arith.constant 0.000000e+00 : f32
    %7 = vector.broadcast %cst_6 : f32 to vector<256x128xf32>
    %8 = arith.maximumf %6, %7 : vector<256x128xf32>
    %9 = vector.shape_cast %8 : vector<256x128xf32> to vector<2x128x128xf32>
    %c0_7 = arith.constant 0 : index
    %c0_8 = arith.constant 0 : index
    %10 = vector.load %arg5[%c0_7, %c0_8] : memref<1x128xf32, #tpu.memory_space<vmem>>, vector<1x128xf32>
    %11 = vector.shape_cast %10 : vector<1x128xf32> to vector<1x1x128xf32>
    %12 = vector.broadcast %11 : vector<1x1x128xf32> to vector<2x128x128xf32>
    %13 = arith.mulf %9, %12 : vector<2x128x128xf32>
    %cst_9 = arith.constant dense<0.000000e+00> : vector<2x128xf32>
    %14 = vector.multi_reduction <add>, %13, %cst_9 [2] : vector<2x128x128xf32> to vector<2x128xf32>
    %c0_10 = arith.constant 0 : index
    %c0_11 = arith.constant 0 : index
    %15 = vector.load %arg6[%c0_10, %c0_11] : memref<1x1xf32, #tpu.memory_space<vmem>>, vector<1x1xf32>
    %16 = vector.broadcast %15 : vector<1x1xf32> to vector<2x128xf32>
    %17 = arith.addf %14, %16 : vector<2x128xf32>
    %18 = tpu.iota {dimensions = array<i32: 1>} : vector<2x128xi32>
    %19 = tpu.iota {dimensions = array<i32: 0>} : vector<2x128xi32>
    %c2_i32 = arith.constant 2 : i32
    %20 = arith.muli %arg0, %c2_i32 : i32
    %c0_i32 = arith.constant 0 : i32
    %21 = vector.broadcast %c0_i32 : i32 to vector<2x128xi32>
    %c0_i32_12 = arith.constant 0 : i32
    %22 = vector.broadcast %c0_i32_12 : i32 to vector<2x128xi32>
    %23 = arith.cmpi eq, %19, %22 : vector<2x128xi32>
    %c0_i32_13 = arith.constant 0 : i32
    %24 = arith.addi %20, %c0_i32_13 : i32
    %25 = arith.index_cast %24 : i32 to index
    %26 = memref.load %arg1[%25] : memref<4xi32, #tpu.memory_space<smem>>
    %27 = vector.broadcast %26 : i32 to vector<2x128xi32>
    %28 = arith.select %23, %27, %21 : vector<2x128xi1>, vector<2x128xi32>
    %c1_i32 = arith.constant 1 : i32
    %29 = vector.broadcast %c1_i32 : i32 to vector<2x128xi32>
    %30 = arith.cmpi eq, %19, %29 : vector<2x128xi32>
    %c1_i32_14 = arith.constant 1 : i32
    %31 = arith.addi %20, %c1_i32_14 : i32
    %32 = arith.index_cast %31 : i32 to index
    %33 = memref.load %arg1[%32] : memref<4xi32, #tpu.memory_space<smem>>
    %34 = vector.broadcast %33 : i32 to vector<2x128xi32>
    %35 = arith.select %30, %34, %28 : vector<2x128xi1>, vector<2x128xi32>
    %36 = arith.cmpi slt, %18, %35 : vector<2x128xi32>
    %cst_15 = arith.constant -3.40282347E+38 : f32
    %37 = vector.broadcast %cst_15 : f32 to vector<2x128xf32>
    %38 = arith.select %36, %17, %37 : vector<2x128xi1>, vector<2x128xf32>
    %cst_16 = arith.constant dense<0xFF800000> : vector<2xf32>
    %39 = vector.multi_reduction <maximumf>, %38, %cst_16 [1] : vector<2x128xf32> to vector<2xf32>
    %40 = vector.shape_cast %39 : vector<2xf32> to vector<2x1xf32>
    %41 = vector.broadcast %40 : vector<2x1xf32> to vector<2x128xf32>
    %42 = arith.subf %38, %41 : vector<2x128xf32>
    %43 = math.exp %42 : vector<2x128xf32>
    %cst_17 = arith.constant dense<0.000000e+00> : vector<2xf32>
    %44 = vector.multi_reduction <add>, %43, %cst_17 [1] : vector<2x128xf32> to vector<2xf32>
    %45 = vector.shape_cast %44 : vector<2xf32> to vector<2x1xf32>
    %46 = tpu.reciprocal %45 : vector<2x1xf32> -> vector<2x1xf32>
    %47 = vector.broadcast %46 : vector<2x1xf32> to vector<2x128xf32>
    %48 = arith.mulf %43, %47 : vector<2x128xf32>
    %c0_18 = arith.constant 0 : index
    %c0_19 = arith.constant 0 : index
    %c0_20 = arith.constant 0 : index
    %49 = vector.load %arg7[%c0_18, %c0_19, %c0_20] : memref<1x2x128xf32, #tpu.memory_space<vmem>>, vector<1x2x128xf32>
    %50 = vector.shape_cast %49 : vector<1x2x128xf32> to vector<2x128xf32>
    %51 = vector.shape_cast %48 : vector<2x128xf32> to vector<1x2x128xf32>
    tpu.vector_store %arg7[%c0_18, %c0_19, %c0_20], %51 {strides = array<i32>} : memref<1x2x128xf32, #tpu.memory_space<vmem>>, vector<1x2x128xf32>,
    return
  }
  func.func @transform_0(%arg0: i32, %arg1: memref<4xi32, #tpu.memory_space<smem>>) -> (i32, i32, i32) {
    %c0_i32 = arith.constant 0 : i32
    %c0_i32_0 = arith.constant 0 : i32
    %c0_i32_1 = arith.constant 0 : i32
    return %arg0, %c0_i32, %c0_i32_0 : i32, i32, i32
  }
  func.func @transform_1(%arg0: i32, %arg1: memref<4xi32, #tpu.memory_space<smem>>) -> (i32, i32) {
    %c0_i32 = arith.constant 0 : i32
    %c0_i32_0 = arith.constant 0 : i32
    %c0_i32_1 = arith.constant 0 : i32
    return %c0_i32, %c0_i32_0 : i32, i32
  }
  func.func @transform_2(%arg0: i32, %arg1: memref<4xi32, #tpu.memory_space<smem>>) -> (i32, i32) {
    %c0_i32 = arith.constant 0 : i32
    %c0_i32_0 = arith.constant 0 : i32
    %c0_i32_1 = arith.constant 0 : i32
    return %c0_i32, %c0_i32_0 : i32, i32
  }
  func.func @transform_3(%arg0: i32, %arg1: memref<4xi32, #tpu.memory_space<smem>>) -> (i32, i32) {
    %c0_i32 = arith.constant 0 : i32
    %c0_i32_0 = arith.constant 0 : i32
    %c0_i32_1 = arith.constant 0 : i32
    return %c0_i32, %c0_i32_0 : i32, i32
  }
  func.func @transform_4(%arg0: i32, %arg1: memref<4xi32, #tpu.memory_space<smem>>) -> (i32, i32) {
    %c0_i32 = arith.constant 0 : i32
    %c0_i32_0 = arith.constant 0 : i32
    %c0_i32_1 = arith.constant 0 : i32
    return %c0_i32, %c0_i32_0 : i32, i32
  }
  func.func @transform_5(%arg0: i32, %arg1: memref<4xi32, #tpu.memory_space<smem>>) -> (i32, i32, i32) {
    %c0_i32 = arith.constant 0 : i32
    %c0_i32_0 = arith.constant 0 : i32
    %c0_i32_1 = arith.constant 0 : i32
    return %arg0, %c0_i32, %c0_i32_0 : i32, i32, i32
  }
}

</mosaic_0001>

<llo_original>
// kernel: tpu_custom_call.1
$region0: #{tpu_custom_call.1}
  #allocation0 [shape = 'u32[]', space=smem, size = 0x4, offset = 0x4, fixed_abs, tag = 'smem constant byte address 0x4 - core index']
  #allocation1 [shape = 'u32[144,128]{1,0:T(1,128)}', space=vmem, size = 0x12000, scoped, tag = 'internal scratch']
  #allocation2 [shape = 's32[1]{0}', space=sflag, size = 0x4, scoped, tag = 'scoped memory for tpu_custom_call.1']
  #allocation3 [shape = 'u8[512]{0}', space=smem, size = 0x200, scoped, tag = 'prefetched SMEM operand 0']
  #allocation4 [shape = 'f32[1,1]{1,0:T(1,128)S(1)}', space=vmem, size = 0x200, scoped, tag = 'scoped memory for tpu_custom_call.1']
  %s0 = inlined_call_operand.vmem [shape: s32[4], index: 0, kind: input, shape index: {}]
  %s1 = inlined_call_operand.hbm [shape: bf16[4,128,128], index: 1, kind: input, shape index: {}]
  %s2 = inlined_call_operand.hbm [shape: bf16[128,128], index: 2, kind: input, shape index: {}]
  %s3 = inlined_call_operand.vmem [shape: f32[1,128], index: 3, kind: input, shape index: {}]
  %s4 = inlined_call_operand.vmem [shape: f32[1,128], index: 4, kind: input, shape index: {}]
  %s5 = inlined_call_operand.<no memory space> [shape: f32[1,1], index: 5, kind: input, shape index: {}]
  %s6 = inlined_call_operand.hbm [shape: f32[2,2,128], index: 6, kind: output, shape index: {}]
  %s7 = sld [smem:[#allocation0]]
  $region61: #{tpu_custom_call.1} parent=0
    _
  %s9 = ssub.s32 1, %s7
  %s10 = scalar_select 0, %s9, %s7
  %s11 = sshll.u32 %s0, 4
  %s12 = int_to_ptr.vmem [resolvable:$true] %s11
  %14 = dma.vmem_to_smem %s12, 16, [#allocation3], [#allocation2]
  %v15 = vstv %s5
  %16 = vst [vmem:[#allocation4] sm:$0x1] %v15
  %17 = dma.done [#allocation2], 16
  %18 = sfence
  $region1: #{tpu_custom_call.1} parent=0
    #allocation5 [shape = 'u8[131072]{0}', space=vmem, size = 0x20000, scoped, tag = 'input window, operand 1']
    #allocation6 [shape = 's32[2]{0}', space=sflag, size = 0x8, scoped, tag = 'scoped memory for tpu_custom_call.1']
    #allocation7 [shape = 's32[2]{0}', space=sflag, size = 0x8, scoped, tag = 'scoped memory for tpu_custom_call.1']
    #allocation8 [shape = 'u8[32768]{0}', space=vmem, size = 0x8000, scoped, tag = 'input window, operand 2, single buffered']
    #allocation9 [shape = 's32[1]{0}', space=sflag, size = 0x4, scoped, tag = 'scoped memory for tpu_custom_call.1']
    #allocation10 [shape = 'u8[2048]{0}', space=vmem, size = 0x800, scoped, tag = 'output window, operand 0']
    %19 = vsyncpa [#allocation6], 0
    %s20 = scalar_lea.sflag [#allocation6], 1
    %21 = vsyncpa %s20, 0
    %22 = vsyncpa [#allocation9], 0
    %23 = vsyncpa [#allocation7], 0
    %s24 = scalar_lea.sflag [#allocation7], 1
    %25 = vsyncpa %s24, 0
    loop: start=0, step=1, limit=4
    $region2: #{tpu_custom_call.1} parent=1 // loop_pre_header
      _
    $region3: #{tpu_custom_call.1} parent=1 // loop_header
      %s27 = sphi 0, %s31
      %p28 = scmp.ge.s32.totalorder %s27, 4
      %s37 = sphi 0, %s39
      %s40 = sphi 0, %s37
      %s41 = sphi 0, %s40
      %s57 = sphi 0, %s41
      %s61 = sphi 0, %s61
      %s63 = sphi 0, %s61
      %s64 = sphi 0, %s63
      %s78 = sphi 0, %s64
      %s82 = sphi 0, %s82
      %s84 = sphi 0, %s82
      %s85 = sphi 0, %s84
      %s99 = sphi 0, %s85
      %s103 = sphi 0, %s103
      %s105 = sphi 0, %s103
      %s106 = sphi 0, %s105
      %s120 = sphi 0, %s106
      %s124 = sphi 0, %s124
      %s126 = sphi 0, %s124
      %s127 = sphi 0, %s126
      %s141 = sphi 0, %s127
      %s147 = sphi 0, %s149
      %s150 = sphi 0, %s147
      %s151 = sphi 0, %s150
      %s167 = sphi 0, %s151
    $region4: #{tpu_custom_call.1} parent=1 // loop_header_branch
      %30 = sbr.rel (%p28) target = $region8
    $region5: #{tpu_custom_call.1} parent=1 // loop_body
      %s32 = ssub.s32 %s27, 1
      %s33 = ssub.s32 %s27, 2
      %s34 = sadd.s32 %s27, 1
      %s35 = ssub.s32 %s27, %s34
      %p36 = scmp.eq.s32.totalorder %s35, 0
      %s38 = sadd.s32 %s37, 1
      %s39 = scalar_select %p36, %s37, %s38
      %p42 = pneg %p36
      %p43 = scmp.eq.s32.totalorder %s27, 1
      %p44 = por %p42, %p43
      %p45 = scmp.ne.s32.totalorder %s37, %s40
      %p46 = scmp.eq.s32.totalorder %s27, 0
      %p47 = por %p45, %p46
      %p48 = scmp.ne.s32.totalorder %s37, %s40
      %p49 = scmp.eq.s32.totalorder %s32, 1
      %p50 = por %p48, %p49
      %p51 = scmp.ne.s32.totalorder %s40, %s41
      %p52 = scmp.eq.s32.totalorder %s32, 0
      %p53 = por %p51, %p52
      %p54 = scmp.ne.s32.totalorder %s40, %s41
      %p55 = scmp.eq.s32.totalorder %s33, 1
      %p56 = por %p54, %p55
      %p58 = scmp.ne.s32.totalorder %s41, %s57
      %p59 = scmp.eq.s32.totalorder %s33, 0
      %p60 = por %p58, %p59
      %s62 = sadd.s32 %s61, 1
      %p65 = scmp.eq.s32.totalorder %s27, 1
      %p66 = scmp.ne.s32.totalorder %s61, %s63
      %p67 = scmp.eq.s32.totalorder %s27, 0
      %p68 = por %p66, %p67
      %p69 = scmp.ne.s32.totalorder %s61, %s63
      %p70 = scmp.eq.s32.totalorder %s32, 1
      %p71 = por %p69, %p70
      %p72 = scmp.ne.s32.totalorder %s63, %s64
      %p73 = scmp.eq.s32.totalorder %s32, 0
      %p74 = por %p72, %p73
      %p75 = scmp.ne.s32.totalorder %s63, %s64
      %p76 = scmp.eq.s32.totalorder %s33, 1
      %p77 = por %p75, %p76
      %p79 = scmp.ne.s32.totalorder %s64, %s78
      %p80 = scmp.eq.s32.totalorder %s33, 0
      %p81 = por %p79, %p80
      %s83 = sadd.s32 %s82, 1
      %p86 = scmp.eq.s32.totalorder %s27, 1
      %p87 = scmp.ne.s32.totalorder %s82, %s84
      %p88 = scmp.eq.s32.totalorder %s27, 0
      %p89 = por %p87, %p88
      %p90 = scmp.ne.s32.totalorder %s82, %s84
      %p91 = scmp.eq.s32.totalorder %s32, 1
      %p92 = por %p90, %p91
      %p93 = scmp.ne.s32.totalorder %s84, %s85
      %p94 = scmp.eq.s32.totalorder %s32, 0
      %p95 = por %p93, %p94
      %p96 = scmp.ne.s32.totalorder %s84, %s85
      %p97 = scmp.eq.s32.totalorder %s33, 1
      %p98 = por %p96, %p97
      %p100 = scmp.ne.s32.totalorder %s85, %s99
      %p101 = scmp.eq.s32.totalorder %s33, 0
      %p102 = por %p100, %p101
      %s104 = sadd.s32 %s103, 1
      %p107 = scmp.eq.s32.totalorder %s27, 1
      %p108 = scmp.ne.s32.totalorder %s103, %s105
      %p109 = scmp.eq.s32.totalorder %s27, 0
      %p110 = por %p108, %p109
      %p111 = scmp.ne.s32.totalorder %s103, %s105
      %p112 = scmp.eq.s32.totalorder %s32, 1
      %p113 = por %p111, %p112
      %p114 = scmp.ne.s32.totalorder %s105, %s106
      %p115 = scmp.eq.s32.totalorder %s32, 0
      %p116 = por %p114, %p115
      %p117 = scmp.ne.s32.totalorder %s105, %s106
      %p118 = scmp.eq.s32.totalorder %s33, 1
      %p119 = por %p117, %p118
      %p121 = scmp.ne.s32.totalorder %s106, %s120
      %p122 = scmp.eq.s32.totalorder %s33, 0
      %p123 = por %p121, %p122
      %s125 = sadd.s32 %s124, 1
      %p128 = scmp.eq.s32.totalorder %s27, 1
      %p129 = scmp.ne.s32.totalorder %s124, %s126
      %p130 = scmp.eq.s32.totalorder %s27, 0
      %p131 = por %p129, %p130
      %p132 = scmp.ne.s32.totalorder %s124, %s126
      %p133 = scmp.eq.s32.totalorder %s32, 1
      %p134 = por %p132, %p133
      %p135 = scmp.ne.s32.totalorder %s126, %s127
      %p136 = scmp.eq.s32.totalorder %s32, 0
      %p137 = por %p135, %p136
      %p138 = scmp.ne.s32.totalorder %s126, %s127
      %p139 = scmp.eq.s32.totalorder %s33, 1
      %p140 = por %p138, %p139
      %p142 = scmp.ne.s32.totalorder %s127, %s141
      %p143 = scmp.eq.s32.totalorder %s33, 0
      %p144 = por %p142, %p143
      %s145 = ssub.s32 %s27, %s34
      %p146 = scmp.eq.s32.totalorder %s145, 0
      %s148 = sadd.s32 %s147, 1
      %s149 = scalar_select %p146, %s147, %s148
      %p152 = pneg %p146
      %p153 = scmp.eq.s32.totalorder %s27, 1
      %p154 = por %p152, %p153
      %p155 = scmp.ne.s32.totalorder %s147, %s150
      %p156 = scmp.eq.s32.totalorder %s27, 0
      %p157 = por %p155, %p156
      %p158 = scmp.ne.s32.totalorder %s147, %s150
      %p159 = scmp.eq.s32.totalorder %s32, 1
      %p160 = por %p158, %p159
      %p161 = scmp.ne.s32.totalorder %s150, %s151
      %p162 = scmp.eq.s32.totalorder %s32, 0
      %p163 = por %p161, %p162
      %p164 = scmp.ne.s32.totalorder %s150, %s151
      %p165 = scmp.eq.s32.totalorder %s33, 1
      %p166 = por %p164, %p165
      %p168 = scmp.ne.s32.totalorder %s151, %s167
      %p169 = scmp.eq.s32.totalorder %s33, 0
      %p170 = por %p168, %p169
      %p171 = scmp.le.s32.totalorder 1, %s27
      %p172 = scmp.lt.s32.totalorder %s27, 3
      %p173 = pnand %p171, %p172
      %p174 = pneg %p173
      // Predicated region
      $region9: #{tpu_custom_call.1} parent=5 // pred_check
        _
      $region10: #{tpu_custom_call.1} parent=5 // pred_check_branch
        %176 = sbr.rel (%p173) target = $region12
      $region11: #{tpu_custom_call.1} parent=5 // pred_region
        %s177 = ssub.s32 %s27, 1
        // Predicated region
        $region13: #{tpu_custom_call.1} parent=11 // pred_check
          %p178 = pneg %p74
        $region14: #{tpu_custom_call.1} parent=11 // pred_check_branch
          %180 = sbr.rel (%p178) target = $region16
        $region15: #{tpu_custom_call.1} parent=11 // pred_region
          %s182 = ssub.s32 1024, 1024
          %183 = vsyncadd [#allocation9], %s182
          %s184 = sshll.u32 [#allocation8], 4
          %s185 = int_to_ptr.vmem [resolvable:$true] %s184
          %190 = dma.hbm_to_vmem [thread:$0]  %s2, 1024, %s185, [#allocation9], 64, 64, 4
        $region16: #{tpu_custom_call.1} parent=11 // pred_fallthru
          _
        // Predicated region
        $region17: #{tpu_custom_call.1} parent=11 // pred_check
          %p191 = pneg %p95
        $region18: #{tpu_custom_call.1} parent=11 // pred_check_branch
          %193 = sbr.rel (%p191) target = $region20
        $region19: #{tpu_custom_call.1} parent=11 // pred_region
          _
        $region20: #{tpu_custom_call.1} parent=11 // pred_fallthru
          _
        // Predicated region
        $region21: #{tpu_custom_call.1} parent=11 // pred_check
          %p194 = pneg %p116
        $region22: #{tpu_custom_call.1} parent=11 // pred_check_branch
          %196 = sbr.rel (%p194) target = $region24
        $region23: #{tpu_custom_call.1} parent=11 // pred_region
          _
        $region24: #{tpu_custom_call.1} parent=11 // pred_fallthru
          _
        // Predicated region
        $region25: #{tpu_custom_call.1} parent=11 // pred_check
          %p197 = pneg %p137
        $region26: #{tpu_custom_call.1} parent=11 // pred_check_branch
          %199 = sbr.rel (%p197) target = $region28
        $region27: #{tpu_custom_call.1} parent=11 // pred_region
          _
        $region28: #{tpu_custom_call.1} parent=11 // pred_fallthru
          _
      $region12: #{tpu_custom_call.1} parent=5 // pred_fallthru
        _
      %p200 = scmp.lt.s32.totalorder %s27, 2
      // Predicated region
      $region29: #{tpu_custom_call.1} parent=5 // pred_check
        %p201 = pneg %p200
      $region30: #{tpu_custom_call.1} parent=5 // pred_check_branch
        %203 = sbr.rel (%p201) target = $region32
      $region31: #{tpu_custom_call.1} parent=5 // pred_region
        // Predicated region
        $region33: #{tpu_custom_call.1} parent=31 // pred_check
          %p204 = pneg %p47
        $region34: #{tpu_custom_call.1} parent=31 // pred_check_branch
          %206 = sbr.rel (%p204) target = $region36
        $region35: #{tpu_custom_call.1} parent=31 // pred_region
          %s207 = sand.u32 %s37, 1
          %s208 = scalar_lea.sflag [#allocation6], %s207
          %s209 = sand.u32 %s37, 1
          %s210 = smul.addr %s209, 128
          %s211 = scalar_lea.vmem [#allocation5], %s210
          %s212 = smul.u32 2, %s27
          %s214 = ssub.s32 2048, 2048
          %215 = vsyncadd %s208, %s214
          %s216 = smul.addr %s212, 16
          %s217 = smul.addr %s216, 64
          %s218 = scalar_lea.hbm %s1, %s217
          %s219 = sshll.u32 %s211, 4
          %s220 = int_to_ptr.vmem [resolvable:$true] %s219
          %225 = dma.hbm_to_vmem [thread:$0]  %s218, 2048, %s220, %s208, 64, 64, 4
        $region36: #{tpu_custom_call.1} parent=31 // pred_fallthru
          _
      $region32: #{tpu_custom_call.1} parent=5 // pred_fallthru
        _
      %p226 = scmp.le.s32.totalorder 1, %s27
      %p227 = scmp.lt.s32.totalorder %s27, 3
      %p228 = pnand %p226, %p227
      %p229 = pneg %p228
      // Predicated region
      $region37: #{tpu_custom_call.1} parent=5 // pred_check
        _
      $region38: #{tpu_custom_call.1} parent=5 // pred_check_branch
        %231 = sbr.rel (%p228) target = $region40
      $region39: #{tpu_custom_call.1} parent=5 // pred_region
        %s232 = ssub.s32 %s27, 1
        %s233 = sand.u32 %s40, 1
        %s234 = scalar_lea.sflag [#allocation6], %s233
        %s235 = sand.u32 %s40, 1
        %s236 = smul.addr %s235, 128
        %s237 = scalar_lea.vmem [#allocation5], %s236
        // Predicated region
        $region41: #{tpu_custom_call.1} parent=39 // pred_check
          %p238 = pneg %p53
        $region42: #{tpu_custom_call.1} parent=39 // pred_check_branch
          %240 = sbr.rel (%p238) target = $region44
        $region43: #{tpu_custom_call.1} parent=39 // pred_region
          %241 = dma.done %s234, 2048
        $region44: #{tpu_custom_call.1} parent=39 // pred_fallthru
          _
        // Predicated region
        $region45: #{tpu_custom_call.1} parent=39 // pred_check
          %p242 = pneg %p74
        $region46: #{tpu_custom_call.1} parent=39 // pred_check_branch
          %244 = sbr.rel (%p242) target = $region48
        $region47: #{tpu_custom_call.1} parent=39 // pred_region
          %245 = dma.done [#allocation9], 1024
        $region48: #{tpu_custom_call.1} parent=39 // pred_fallthru
          _
        %s246 = sand.u32 %s40, 1
        %s247 = scalar_lea.sflag [#allocation6], %s246
        %s248 = sand.u32 %s40, 1
        %s249 = smul.addr %s248, 128
        %s250 = scalar_lea.vmem [#allocation5], %s249
        %p251 = pneg %p53
        %p252 = pneg %p50
        %p253 = pneg %p74
        %p254 = pneg %p71
        %p255 = pneg %p95
        %p256 = pneg %p92
        %p257 = pneg %p116
        %p258 = pneg %p113
        %p259 = pneg %p137
        %p260 = pneg %p134
        %p261 = pneg %p163
        %p262 = pneg %p160
        %s263 = sand.u32 %s150, 1
        %s264 = scalar_lea.sflag [#allocation7], %s263
        %s265 = sand.u32 %s150, 1
        %s266 = smul.addr %s265, 2
        %s267 = scalar_lea.vmem [#allocation10], %s266
        %s268 = smul.u32 2, %s32
        %v270 = vld [vmem:[%s237] sm:$0xf]
        %v271 = vld [vmem:[%s237 + $0x4] sm:$0xf]
        %v272 = vld [vmem:[%s237 + $0x8] sm:$0xf]
        %v273 = vld [vmem:[%s237 + $0xc] sm:$0xf]
        %v274 = vld [vmem:[%s237 + $0x10] sm:$0xf]
        %v275 = vld [vmem:[%s237 + $0x14] sm:$0xf]
        %v276 = vld [vmem:[%s237 + $0x18] sm:$0xf]
        %v277 = vld [vmem:[%s237 + $0x1c] sm:$0xf]
        %v278 = vld [vmem:[%s237 + $0x20] sm:$0xf]
        %v279 = vld [vmem:[%s237 + $0x24] sm:$0xf]
        %v280 = vld [vmem:[%s237 + $0x28] sm:$0xf]
        %v281 = vld [vmem:[%s237 + $0x2c] sm:$0xf]
        %v282 = vld [vmem:[%s237 + $0x30] sm:$0xf]
        %v283 = vld [vmem:[%s237 + $0x34] sm:$0xf]
        %v284 = vld [vmem:[%s237 + $0x38] sm:$0xf]
        %v285 = vld [vmem:[%s237 + $0x3c] sm:$0xf]
        %v286 = vld [vmem:[%s237 + $0x40] sm:$0xf]
        %v287 = vld [vmem:[%s237 + $0x44] sm:$0xf]
        %v288 = vld [vmem:[%s237 + $0x48] sm:$0xf]
        %v289 = vld [vmem:[%s237 + $0x4c] sm:$0xf]
        %v290 = vld [vmem:[%s237 + $0x50] sm:$0xf]
        %v291 = vld [vmem:[%s237 + $0x54] sm:$0xf]
        %v292 = vld [vmem:[%s237 + $0x58] sm:$0xf]
        %v293 = vld [vmem:[%s237 + $0x5c] sm:$0xf]
        %v294 = vld [vmem:[%s237 + $0x60] sm:$0xf]
        %v295 = vld [vmem:[%s237 + $0x64] sm:$0xf]
        %v296 = vld [vmem:[%s237 + $0x68] sm:$0xf]
        %v297 = vld [vmem:[%s237 + $0x6c] sm:$0xf]
        %v298 = vld [vmem:[%s237 + $0x70] sm:$0xf]
        %v299 = vld [vmem:[%s237 + $0x74] sm:$0xf]
        %v300 = vld [vmem:[%s237 + $0x78] sm:$0xf]
        %v301 = vld [vmem:[%s237 + $0x7c] sm:$0xf]
        %v302 = vld [vmem:[#allocation8] sm:$0xf]
        %v303 = vld [vmem:[#allocation8 + $0x4] sm:$0xf]
        %v304 = vld [vmem:[#allocation8 + $0x8] sm:$0xf]
        %v305 = vld [vmem:[#allocation8 + $0xc] sm:$0xf]
        %v306 = vld [vmem:[#allocation8 + $0x10] sm:$0xf]
        %v307 = vld [vmem:[#allocation8 + $0x14] sm:$0xf]
        %v308 = vld [vmem:[#allocation8 + $0x18] sm:$0xf]
        %v309 = vld [vmem:[#allocation8 + $0x1c] sm:$0xf]
        %v310 = vld [vmem:[#allocation8 + $0x20] sm:$0xf]
        %v311 = vld [vmem:[#allocation8 + $0x24] sm:$0xf]
        %v312 = vld [vmem:[#allocation8 + $0x28] sm:$0xf]
        %v313 = vld [vmem:[#allocation8 + $0x2c] sm:$0xf]
        %v314 = vld [vmem:[#allocation8 + $0x30] sm:$0xf]
        %v315 = vld [vmem:[#allocation8 + $0x34] sm:$0xf]
        %v316 = vld [vmem:[#allocation8 + $0x38] sm:$0xf]
        %v317 = vld [vmem:[#allocation8 + $0x3c] sm:$0xf]
        %v318 = vld [vmem:[%s3] sm:$0x1]
        %v320 = vlaneseq
        %v321 = vshrl.u32 %v320, 7
        %v322 = vsub.s32 0, %v321
        %v323 = vrot.slane %v318, %v322
        %v357 = vunpack.c.l.b16 %v270
        %v358 = vunpack.c.l.b16 %v271
        %v359 = vunpack.c.l.b16 %v272
        %v360 = vunpack.c.l.b16 %v273
        %v361 = vunpack.c.l.b16 %v274
        %v362 = vunpack.c.l.b16 %v275
        %v363 = vunpack.c.l.b16 %v276
        %v364 = vunpack.c.l.b16 %v277
        %v365 = vunpack.c.l.b16 %v278
        %v366 = vunpack.c.l.b16 %v279
        %v367 = vunpack.c.l.b16 %v280
        %v368 = vunpack.c.l.b16 %v281
        %v369 = vunpack.c.l.b16 %v282
        %v370 = vunpack.c.l.b16 %v283
        %v371 = vunpack.c.l.b16 %v284
        %v372 = vunpack.c.l.b16 %v285
        %v373 = vunpack.c.l.b16 %v286
        %v374 = vunpack.c.l.b16 %v287
        %v375 = vunpack.c.l.b16 %v288
        %v376 = vunpack.c.l.b16 %v289
        %v377 = vunpack.c.l.b16 %v290
        %v378 = vunpack.c.l.b16 %v291
        %v379 = vunpack.c.l.b16 %v292
        %v380 = vunpack.c.l.b16 %v293
        %v381 = vunpack.c.l.b16 %v294
        %v382 = vunpack.c.l.b16 %v295
        %v383 = vunpack.c.l.b16 %v296
        %v384 = vunpack.c.l.b16 %v297
        %v385 = vunpack.c.l.b16 %v298
        %v386 = vunpack.c.l.b16 %v299
        %v387 = vunpack.c.l.b16 %v300
        %v388 = vunpack.c.l.b16 %v301
        %v389 = vpack.c.b16 %v358, %v357
        %v390 = vpack.c.b16 %v360, %v359
        %v391 = vpack.c.b16 %v362, %v361
        %v392 = vpack.c.b16 %v364, %v363
        %v393 = vpack.c.b16 %v366, %v365
        %v394 = vpack.c.b16 %v368, %v367
        %v395 = vpack.c.b16 %v370, %v369
        %v396 = vpack.c.b16 %v372, %v371
        %v397 = vpack.c.b16 %v374, %v373
        %v398 = vpack.c.b16 %v376, %v375
        %v399 = vpack.c.b16 %v378, %v377
        %v400 = vpack.c.b16 %v380, %v379
        %v401 = vpack.c.b16 %v382, %v381
        %v402 = vpack.c.b16 %v384, %v383
        %v403 = vpack.c.b16 %v386, %v385
        %v404 = vpack.c.b16 %v388, %v387
        %v437 = vunpack.c.l.b16 %v302
        %v438 = vunpack.c.l.b16 %v303
        %v439 = vunpack.c.l.b16 %v304
        %v440 = vunpack.c.l.b16 %v305
        %v441 = vunpack.c.l.b16 %v306
        %v442 = vunpack.c.l.b16 %v307
        %v443 = vunpack.c.l.b16 %v308
        %v444 = vunpack.c.l.b16 %v309
        %v445 = vunpack.c.l.b16 %v310
        %v446 = vunpack.c.l.b16 %v311
        %v447 = vunpack.c.l.b16 %v312
        %v448 = vunpack.c.l.b16 %v313
        %v449 = vunpack.c.l.b16 %v314
        %v450 = vunpack.c.l.b16 %v315
        %v451 = vunpack.c.l.b16 %v316
        %v452 = vunpack.c.l.b16 %v317
        %v453 = vpack.c.b16 %v438, %v437
        %v454 = vpack.c.b16 %v440, %v439
        %v455 = vpack.c.b16 %v442, %v441
        %v456 = vpack.c.b16 %v444, %v443
        %v457 = vpack.c.b16 %v446, %v445
        %v458 = vpack.c.b16 %v448, %v447
        %v459 = vpack.c.b16 %v450, %v449
        %v460 = vpack.c.b16 %v452, %v451
        %469 = vmatprep.subr.bf16.mxu0 0
        %470 = vmatpush1.bf16.msra.mxu0 %v453
        %471 = vmatprep.subr.bf16.mxu0 0
        %472 = vmatpush1.bf16.msra.mxu0 %v454
        %473 = vmatprep.subr.bf16.mxu0 0
        %474 = vmatpush1.bf16.msra.mxu0 %v455
        %475 = vmatprep.subr.bf16.mxu0 0
        %476 = vmatpush1.bf16.msra.mxu0 %v456
        %477 = vmatprep.subr.bf16.mxu0 0
        %478 = vmatpush1.bf16.msra.mxu0 %v457
        %479 = vmatprep.subr.bf16.mxu0 0
        %480 = vmatpush1.bf16.msra.mxu0 %v458
        %481 = vmatprep.subr.bf16.mxu0 0
        %482 = vmatpush1.bf16.msra.mxu0 %v459
        %483 = vmatprep.subr.bf16.mxu0 0
        %484 = vmatpush1.bf16.msra.mxu0 %v460
        %485 = vmatprep.subr.bf16.mxu0 0
        %486 = vmatpush1.bf16.msra.mxu0 0
        %487 = vmatprep.subr.bf16.mxu0 0
        %488 = vmatpush1.bf16.msra.mxu0 0
        %489 = vmatprep.subr.bf16.mxu0 0
        %490 = vmatpush1.bf16.msra.mxu0 0
        %491 = vmatprep.subr.bf16.mxu0 0
        %492 = vmatpush1.bf16.msra.mxu0 0
        %493 = vmatprep.subr.bf16.mxu0 0
        %494 = vmatpush1.bf16.msra.mxu0 0
        %495 = vmatprep.subr.bf16.mxu0 0
        %496 = vmatpush1.bf16.msra.mxu0 0
        %497 = vmatprep.subr.bf16.mxu0 0
        %498 = vmatpush1.bf16.msra.mxu0 0
        %499 = vmatprep.subr.bf16.mxu0 0
        %500 = vmatpush1.bf16.msra.mxu0 0
        %501 = vmatprep.mubr.bf16.mxu0 0
        %502 = vmatmul.mubr.bf16.gmra.mrb[0].mxu0 %v389
        %v503 = vpop.f32.mrb[0].mxu0
        %v504 = vadd.f32 %v323, %v503
        %v505 = vpop.f32.mrb[0].mxu0
        %v506 = vpop.f32.mrb[0].mxu0
        %v507 = vadd.f32 %v323, %v506
        %v508 = vpop.f32.mrb[0].mxu0
        %509 = vmatprep.mubr.bf16.mxu0 0
        %510 = vmatmul.mubr.bf16.gmra.mrb[0].mxu0 %v390
        %v511 = vpop.f32.mrb[0].mxu0
        %v512 = vadd.f32 %v323, %v511
        %v513 = vpop.f32.mrb[0].mxu0
        %v514 = vpop.f32.mrb[0].mxu0
        %v515 = vadd.f32 %v323, %v514
        %v516 = vpop.f32.mrb[0].mxu0
        %517 = vmatprep.mubr.bf16.mxu0 0
        %518 = vmatmul.mubr.bf16.gmra.mrb[0].mxu0 %v391
        %v519 = vpop.f32.mrb[0].mxu0
        %v520 = vadd.f32 %v323, %v519
        %v521 = vpop.f32.mrb[0].mxu0
        %v522 = vpop.f32.mrb[0].mxu0
        %v523 = vadd.f32 %v323, %v522
        %v524 = vpop.f32.mrb[0].mxu0
        %525 = vmatprep.mubr.bf16.mxu0 0
        %526 = vmatmul.mubr.bf16.gmra.mrb[0].mxu0 %v392
        %v527 = vpop.f32.mrb[0].mxu0
        %v528 = vadd.f32 %v323, %v527
        %v529 = vpop.f32.mrb[0].mxu0
        %v530 = vpop.f32.mrb[0].mxu0
        %v531 = vadd.f32 %v323, %v530
        %v532 = vpop.f32.mrb[0].mxu0
        %533 = vmatprep.mubr.bf16.mxu0 0
        %534 = vmatmul.mubr.bf16.gmra.mrb[0].mxu0 %v393
        %v535 = vpop.f32.mrb[0].mxu0
        %v536 = vadd.f32 %v323, %v535
        %v537 = vpop.f32.mrb[0].mxu0
        %v538 = vpop.f32.mrb[0].mxu0
        %v539 = vadd.f32 %v323, %v538
        %v540 = vpop.f32.mrb[0].mxu0
        %541 = vmatprep.mubr.bf16.mxu0 0
        %542 = vmatmul.mubr.bf16.gmra.mrb[0].mxu0 %v394
        %v543 = vpop.f32.mrb[0].mxu0
        %v544 = vadd.f32 %v323, %v543
        %v545 = vpop.f32.mrb[0].mxu0
        %v546 = vpop.f32.mrb[0].mxu0
        %v547 = vadd.f32 %v323, %v546
        %v548 = vpop.f32.mrb[0].mxu0
        %549 = vmatprep.mubr.bf16.mxu0 0
        %550 = vmatmul.mubr.bf16.gmra.mrb[0].mxu0 %v395
        %v551 = vpop.f32.mrb[0].mxu0
        %v552 = vadd.f32 %v323, %v551
        %v553 = vpop.f32.mrb[0].mxu0
        %v554 = vpop.f32.mrb[0].mxu0
        %v555 = vadd.f32 %v323, %v554
        %v556 = vpop.f32.mrb[0].mxu0
        %557 = vmatprep.mubr.bf16.mxu0 0
        %558 = vmatmul.mubr.bf16.gmra.mrb[0].mxu0 %v396
        %v559 = vpop.f32.mrb[0].mxu0
        %v560 = vadd.f32 %v323, %v559
        %v561 = vpop.f32.mrb[0].mxu0
        %v562 = vpop.f32.mrb[0].mxu0
        %v563 = vadd.f32 %v323, %v562
        %v564 = vpop.f32.mrb[0].mxu0
        %565 = vmatprep.mubr.bf16.mxu0 0
        %566 = vmatmul.mubr.bf16.gmra.mrb[0].mxu0 %v397
        %v567 = vpop.f32.mrb[0].mxu0
        %v568 = vadd.f32 %v323, %v567
        %v569 = vpop.f32.mrb[0].mxu0
        %v570 = vpop.f32.mrb[0].mxu0
        %v571 = vadd.f32 %v323, %v570
        %v572 = vpop.f32.mrb[0].mxu0
        %573 = vmatprep.mubr.bf16.mxu0 0
        %574 = vmatmul.mubr.bf16.gmra.mrb[0].mxu0 %v398
        %v575 = vpop.f32.mrb[0].mxu0
        %v576 = vadd.f32 %v323, %v575
        %v577 = vpop.f32.mrb[0].mxu0
        %v578 = vpop.f32.mrb[0].mxu0
        %v579 = vadd.f32 %v323, %v578
        %v580 = vpop.f32.mrb[0].mxu0
        %581 = vmatprep.mubr.bf16.mxu0 0
        %582 = vmatmul.mubr.bf16.gmra.mrb[0].mxu0 %v399
        %v583 = vpop.f32.mrb[0].mxu0
        %v584 = vadd.f32 %v323, %v583
        %v585 = vpop.f32.mrb[0].mxu0
        %v586 = vpop.f32.mrb[0].mxu0
        %v587 = vadd.f32 %v323, %v586
        %v588 = vpop.f32.mrb[0].mxu0
        %589 = vmatprep.mubr.bf16.mxu0 0
        %590 = vmatmul.mubr.bf16.gmra.mrb[0].mxu0 %v400
        %v591 = vpop.f32.mrb[0].mxu0
        %v592 = vadd.f32 %v323, %v591
        %v593 = vpop.f32.mrb[0].mxu0
        %v594 = vpop.f32.mrb[0].mxu0
        %v595 = vadd.f32 %v323, %v594
        %v596 = vpop.f32.mrb[0].mxu0
        %597 = vmatprep.mubr.bf16.mxu0 0
        %598 = vmatmul.mubr.bf16.gmra.mrb[0].mxu0 %v401
        %v599 = vpop.f32.mrb[0].mxu0
        %v600 = vadd.f32 %v323, %v599
        %v601 = vpop.f32.mrb[0].mxu0
        %v602 = vpop.f32.mrb[0].mxu0
        %v603 = vadd.f32 %v323, %v602
        %v604 = vpop.f32.mrb[0].mxu0
        %605 = vmatprep.mubr.bf16.mxu0 0
        %606 = vmatmul.mubr.bf16.gmra.mrb[0].mxu0 %v402
        %v607 = vpop.f32.mrb[0].mxu0
        %v608 = vadd.f32 %v323, %v607
        %v609 = vpop.f32.mrb[0].mxu0
        %v610 = vpop.f32.mrb[0].mxu0
        %v611 = vadd.f32 %v323, %v610
        %v612 = vpop.f32.mrb[0].mxu0
        %613 = vmatprep.mubr.bf16.mxu0 0
        %614 = vmatmul.mubr.bf16.gmra.mrb[0].mxu0 %v403
        %v615 = vpop.f32.mrb[0].mxu0
        %v616 = vadd.f32 %v323, %v615
        %v617 = vpop.f32.mrb[0].mxu0
        %v618 = vpop.f32.mrb[0].mxu0
        %v619 = vadd.f32 %v323, %v618
        %v620 = vpop.f32.mrb[0].mxu0
        %621 = vmatprep.mubr.bf16.mxu0 0
        %622 = vmatmul.mubr.bf16.gmra.mrb[0].mxu0 %v404
        %v623 = vpop.f32.mrb[0].mxu0
        %v624 = vadd.f32 %v323, %v623
        %v625 = vpop.f32.mrb[0].mxu0
        %v626 = vpop.f32.mrb[0].mxu0
        %v627 = vadd.f32 %v323, %v626
        %v628 = vpop.f32.mrb[0].mxu0
        %629 = vdwg.mxu0
        %v630 = vmax.f32 %v504, 0.0
        %v631 = vmax.f32 %v507, 0.0
        %v632 = vmax.f32 %v512, 0.0
        %v633 = vmax.f32 %v515, 0.0
        %v634 = vmax.f32 %v520, 0.0
        %v635 = vmax.f32 %v523, 0.0
        %v636 = vmax.f32 %v528, 0.0
        %v637 = vmax.f32 %v531, 0.0
        %v638 = vmax.f32 %v536, 0.0
        %v639 = vmax.f32 %v539, 0.0
        %v640 = vmax.f32 %v544, 0.0
        %v641 = vmax.f32 %v547, 0.0
        %v642 = vmax.f32 %v552, 0.0
        %v643 = vmax.f32 %v555, 0.0
        %v644 = vmax.f32 %v560, 0.0
        %v645 = vmax.f32 %v563, 0.0
        %v646 = vmax.f32 %v568, 0.0
        %v647 = vmax.f32 %v571, 0.0
        %v648 = vmax.f32 %v576, 0.0
        %v649 = vmax.f32 %v579, 0.0
        %v650 = vmax.f32 %v584, 0.0
        %v651 = vmax.f32 %v587, 0.0
        %v652 = vmax.f32 %v592, 0.0
        %v653 = vmax.f32 %v595, 0.0
        %v654 = vmax.f32 %v600, 0.0
        %v655 = vmax.f32 %v603, 0.0
        %v656 = vmax.f32 %v608, 0.0
        %v657 = vmax.f32 %v611, 0.0
        %v658 = vmax.f32 %v616, 0.0
        %v659 = vmax.f32 %v619, 0.0
        %v660 = vmax.f32 %v624, 0.0
        %v661 = vmax.f32 %v627, 0.0
        %v662 = vld [vmem:[%s4] sm:$0x1]
        %v664 = vlaneseq
        %v665 = vshrl.u32 %v664, 7
        %v666 = vsub.s32 0, %v665
        %v667 = vrot.slane %v662, %v666
        %v669 = vmul.f32 %v630, %v667
        %v670 = vmul.f32 %v631, %v667
        %v671 = vmul.f32 %v632, %v667
        %v672 = vmul.f32 %v633, %v667
        %v673 = vmul.f32 %v634, %v667
        %v674 = vmul.f32 %v635, %v667
        %v675 = vmul.f32 %v636, %v667
        %v676 = vmul.f32 %v637, %v667
        %v677 = vmul.f32 %v638, %v667
        %v678 = vmul.f32 %v639, %v667
        %v679 = vmul.f32 %v640, %v667
        %v680 = vmul.f32 %v641, %v667
        %v681 = vmul.f32 %v642, %v667
        %v682 = vmul.f32 %v643, %v667
        %v683 = vmul.f32 %v644, %v667
        %v684 = vmul.f32 %v645, %v667
        %v685 = vmul.f32 %v646, %v667
        %v686 = vmul.f32 %v647, %v667
        %v687 = vmul.f32 %v648, %v667
        %v688 = vmul.f32 %v649, %v667
        %v689 = vmul.f32 %v650, %v667
        %v690 = vmul.f32 %v651, %v667
        %v691 = vmul.f32 %v652, %v667
        %v692 = vmul.f32 %v653, %v667
        %v693 = vmul.f32 %v654, %v667
        %v694 = vmul.f32 %v655, %v667
        %v695 = vmul.f32 %v656, %v667
        %v696 = vmul.f32 %v657, %v667
        %v697 = vmul.f32 %v658, %v667
        %v698 = vmul.f32 %v659, %v667
        %v699 = vmul.f32 %v660, %v667
        %v700 = vmul.f32 %v661, %v667
        %701 = vadd.xlane.f32.xlu0 %v669
        %v702 = vpop.xlane.xlu0 %701
        %703 = vadd.xlane.f32.xlu0 %v670
        %v704 = vpop.xlane.xlu0 %703
        %705 = vadd.xlane.f32.xlu0 %v671
        %v706 = vpop.xlane.xlu0 %705
        %707 = vadd.xlane.f32.xlu0 %v672
        %v708 = vpop.xlane.xlu0 %707
        %709 = vadd.xlane.f32.xlu0 %v673
        %v710 = vpop.xlane.xlu0 %709
        %711 = vadd.xlane.f32.xlu0 %v674
        %v712 = vpop.xlane.xlu0 %711
        %713 = vadd.xlane.f32.xlu0 %v675
        %v714 = vpop.xlane.xlu0 %713
        %715 = vadd.xlane.f32.xlu0 %v676
        %v716 = vpop.xlane.xlu0 %715
        %717 = vadd.xlane.f32.xlu0 %v677
        %v718 = vpop.xlane.xlu0 %717
        %719 = vadd.xlane.f32.xlu0 %v678
        %v720 = vpop.xlane.xlu0 %719
        %721 = vadd.xlane.f32.xlu0 %v679
        %v722 = vpop.xlane.xlu0 %721
        %723 = vadd.xlane.f32.xlu0 %v680
        %v724 = vpop.xlane.xlu0 %723
        %725 = vadd.xlane.f32.xlu0 %v681
        %v726 = vpop.xlane.xlu0 %725
        %727 = vadd.xlane.f32.xlu0 %v682
        %v728 = vpop.xlane.xlu0 %727
        %729 = vadd.xlane.f32.xlu0 %v683
        %v730 = vpop.xlane.xlu0 %729
        %731 = vadd.xlane.f32.xlu0 %v684
        %v732 = vpop.xlane.xlu0 %731
        %733 = vadd.xlane.f32.xlu0 %v685
        %v734 = vpop.xlane.xlu0 %733
        %735 = vadd.xlane.f32.xlu0 %v686
        %v736 = vpop.xlane.xlu0 %735
        %737 = vadd.xlane.f32.xlu0 %v687
        %v738 = vpop.xlane.xlu0 %737
        %739 = vadd.xlane.f32.xlu0 %v688
        %v740 = vpop.xlane.xlu0 %739
        %741 = vadd.xlane.f32.xlu0 %v689
        %v742 = vpop.xlane.xlu0 %741
        %743 = vadd.xlane.f32.xlu0 %v690
        %v744 = vpop.xlane.xlu0 %743
        %745 = vadd.xlane.f32.xlu0 %v691
        %v746 = vpop.xlane.xlu0 %745
        %747 = vadd.xlane.f32.xlu0 %v692
        %v748 = vpop.xlane.xlu0 %747
        %749 = vadd.xlane.f32.xlu0 %v693
        %v750 = vpop.xlane.xlu0 %749
        %751 = vadd.xlane.f32.xlu0 %v694
        %v752 = vpop.xlane.xlu0 %751
        %753 = vadd.xlane.f32.xlu0 %v695
        %v754 = vpop.xlane.xlu0 %753
        %755 = vadd.xlane.f32.xlu0 %v696
        %v756 = vpop.xlane.xlu0 %755
        %757 = vadd.xlane.f32.xlu0 %v697
        %v758 = vpop.xlane.xlu0 %757
        %759 = vadd.xlane.f32.xlu0 %v698
        %v760 = vpop.xlane.xlu0 %759
        %761 = vadd.xlane.f32.xlu0 %v699
        %v762 = vpop.xlane.xlu0 %761
        %763 = vadd.xlane.f32.xlu0 %v700
        %v764 = vpop.xlane.xlu0 %763
        %v765 = vld [vmem:[#allocation4] sm:$0x1]
        %v767 = vlaneseq
        %v768 = vshrl.u32 %v767, 7
        %v769 = vsub.s32 0, %v768
        %v770 = vrot.slane %v765, %v769
        %771 = vset.pattern.permute.xlu0 0
        %772 = vperm.xlu0 %771, %v770
        %v773 = vpop.permute.xlu0 %772
        %v775 = vadd.f32 %v702, %v773
        %v776 = vadd.f32 %v704, %v773
        %v777 = vadd.f32 %v706, %v773
        %v778 = vadd.f32 %v708, %v773
        %v779 = vadd.f32 %v710, %v773
        %v780 = vadd.f32 %v712, %v773
        %v781 = vadd.f32 %v714, %v773
        %v782 = vadd.f32 %v716, %v773
        %v783 = vadd.f32 %v718, %v773
        %v784 = vadd.f32 %v720, %v773
        %v785 = vadd.f32 %v722, %v773
        %v786 = vadd.f32 %v724, %v773
        %v787 = vadd.f32 %v726, %v773
        %v788 = vadd.f32 %v728, %v773
        %v789 = vadd.f32 %v730, %v773
        %v790 = vadd.f32 %v732, %v773
        %v791 = vadd.f32 %v734, %v773
        %v792 = vadd.f32 %v736, %v773
        %v793 = vadd.f32 %v738, %v773
        %v794 = vadd.f32 %v740, %v773
        %v795 = vadd.f32 %v742, %v773
        %v796 = vadd.f32 %v744, %v773
        %v797 = vadd.f32 %v746, %v773
        %v798 = vadd.f32 %v748, %v773
        %v799 = vadd.f32 %v750, %v773
        %v800 = vadd.f32 %v752, %v773
        %v801 = vadd.f32 %v754, %v773
        %v802 = vadd.f32 %v756, %v773
        %v803 = vadd.f32 %v758, %v773
        %v804 = vadd.f32 %v760, %v773
        %v805 = vadd.f32 %v762, %v773
        %v806 = vadd.f32 %v764, %v773
        %v807 = vlaneseq
        %v808 = vand.u32 %v807, 127
        %v809 = vlaneseq
        %v810 = vshrl.u32 %v809, 7
        %s811 = smul.u32 %s32, 2
        %vm812 = vcmp.eq.s32.totalorder %v810, 0
        %s813 = sld [smem:[#allocation3 + %s811]]
        %v814 = vstv %s813
        %v815 = vsel %vm812, %v814, 0
        %vm816 = vcmp.eq.s32.totalorder %v810, 1
        %s817 = sadd.s32 %s811, 1
        %s818 = sld [smem:[#allocation3 + %s817]]
        %v819 = vstv %s818
        %v820 = vsel %vm816, %v819, %v815
        %vm821 = vcmp.lt.s32.totalorder %v808, %v820
        %v854 = vlaneseq
        %v855 = vshrl.u32 %v854, 7
        %v856 = vsub.s32 %v808, %v855
        %v857 = vrot.slane %v775, %v856
        %v858 = vadd.s32 %v808, 4294967288
        %v859 = vlaneseq
        %v860 = vshrl.u32 %v859, 7
        %v861 = vsub.s32 %v858, %v860
        %v862 = vrot.slane %v776, %v861
        %vm863 = vcmask 130112
        %v864 = vsel %vm863, %v862, %v857
        %v865 = vadd.s32 %v808, 4294967280
        %v866 = vlaneseq
        %v867 = vshrl.u32 %v866, 7
        %v868 = vsub.s32 %v865, %v867
        %v869 = vrot.slane %v777, %v868
        %vm870 = vcmask 195712
        %v871 = vsel %vm870, %v869, %v864
        %v872 = vadd.s32 %v808, 4294967272
        %v873 = vlaneseq
        %v874 = vshrl.u32 %v873, 7
        %v875 = vsub.s32 %v872, %v874
        %v876 = vrot.slane %v778, %v875
        %vm877 = vcmask 261312
        %v878 = vsel %vm877, %v876, %v871
        %v879 = vadd.s32 %v808, 4294967264
        %v880 = vlaneseq
        %v881 = vshrl.u32 %v880, 7
        %v882 = vsub.s32 %v879, %v881
        %v883 = vrot.slane %v779, %v882
        %vm884 = vcmask 326912
        %v885 = vsel %vm884, %v883, %v878
        %v886 = vadd.s32 %v808, 4294967256
        %v887 = vlaneseq
        %v888 = vshrl.u32 %v887, 7
        %v889 = vsub.s32 %v886, %v888
        %v890 = vrot.slane %v780, %v889
        %vm891 = vcmask 392512
        %v892 = vsel %vm891, %v890, %v885
        %v893 = vadd.s32 %v808, 4294967248
        %v894 = vlaneseq
        %v895 = vshrl.u32 %v894, 7
        %v896 = vsub.s32 %v893, %v895
        %v897 = vrot.slane %v781, %v896
        %vm898 = vcmask 458112
        %v899 = vsel %vm898, %v897, %v892
        %v900 = vadd.s32 %v808, 4294967240
        %v901 = vlaneseq
        %v902 = vshrl.u32 %v901, 7
        %v903 = vsub.s32 %v900, %v902
        %v904 = vrot.slane %v782, %v903
        %vm905 = vcmask 523712
        %v906 = vsel %vm905, %v904, %v899
        %v907 = vadd.s32 %v808, 4294967232
        %v908 = vlaneseq
        %v909 = vshrl.u32 %v908, 7
        %v910 = vsub.s32 %v907, %v909
        %v911 = vrot.slane %v783, %v910
        %vm912 = vcmask 589312
        %v913 = vsel %vm912, %v911, %v906
        %v914 = vadd.s32 %v808, 4294967224
        %v915 = vlaneseq
        %v916 = vshrl.u32 %v915, 7
        %v917 = vsub.s32 %v914, %v916
        %v918 = vrot.slane %v784, %v917
        %vm919 = vcmask 654912
        %v920 = vsel %vm919, %v918, %v913
        %v921 = vadd.s32 %v808, 4294967216
        %v922 = vlaneseq
        %v923 = vshrl.u32 %v922, 7
        %v924 = vsub.s32 %v921, %v923
        %v925 = vrot.slane %v785, %v924
        %vm926 = vcmask 720512
        %v927 = vsel %vm926, %v925, %v920
        %v928 = vadd.s32 %v808, 4294967208
        %v929 = vlaneseq
        %v930 = vshrl.u32 %v929, 7
        %v931 = vsub.s32 %v928, %v930
        %v932 = vrot.slane %v786, %v931
        %vm933 = vcmask 786112
        %v934 = vsel %vm933, %v932, %v927
        %v935 = vadd.s32 %v808, 4294967200
        %v936 = vlaneseq
        %v937 = vshrl.u32 %v936, 7
        %v938 = vsub.s32 %v935, %v937
        %v939 = vrot.slane %v787, %v938
        %vm940 = vcmask 851712
        %v941 = vsel %vm940, %v939, %v934
        %v942 = vadd.s32 %v808, 4294967192
        %v943 = vlaneseq
        %v944 = vshrl.u32 %v943, 7
        %v945 = vsub.s32 %v942, %v944
        %v946 = vrot.slane %v788, %v945
        %vm947 = vcmask 917312
        %v948 = vsel %vm947, %v946, %v941
        %v949 = vadd.s32 %v808, 4294967184
        %v950 = vlaneseq
        %v951 = vshrl.u32 %v950, 7
        %v952 = vsub.s32 %v949, %v951
        %v953 = vrot.slane %v789, %v952
        %vm954 = vcmask 982912
        %v955 = vsel %vm954, %v953, %v948
        %v956 = vadd.s32 %v808, 4294967176
        %v957 = vlaneseq
        %v958 = vshrl.u32 %v957, 7
        %v959 = vsub.s32 %v956, %v958
        %v960 = vrot.slane %v790, %v959
        %vm961 = vcmask 1048512
        %v962 = vsel %vm961, %v960, %v955
        %v963 = vlaneseq
        %v964 = vshrl.u32 %v963, 7
        %v965 = vsub.s32 %v808, %v964
        %v966 = vrot.slane %v791, %v965
        %v967 = vlaneseq
        %v968 = vshrl.u32 %v967, 7
        %v969 = vsub.s32 %v858, %v968
        %v970 = vrot.slane %v792, %v969
        %v971 = vsel %vm863, %v970, %v966
        %v972 = vlaneseq
        %v973 = vshrl.u32 %v972, 7
        %v974 = vsub.s32 %v865, %v973
        %v975 = vrot.slane %v793, %v974
        %v976 = vsel %vm870, %v975, %v971
        %v977 = vlaneseq
        %v978 = vshrl.u32 %v977, 7
        %v979 = vsub.s32 %v872, %v978
        %v980 = vrot.slane %v794, %v979
        %v981 = vsel %vm877, %v980, %v976
        %v982 = vlaneseq
        %v983 = vshrl.u32 %v982, 7
        %v984 = vsub.s32 %v879, %v983
        %v985 = vrot.slane %v795, %v984
        %v986 = vsel %vm884, %v985, %v981
        %v987 = vlaneseq
        %v988 = vshrl.u32 %v987, 7
        %v989 = vsub.s32 %v886, %v988
        %v990 = vrot.slane %v796, %v989
        %v991 = vsel %vm891, %v990, %v986
        %v992 = vlaneseq
        %v993 = vshrl.u32 %v992, 7
        %v994 = vsub.s32 %v893, %v993
        %v995 = vrot.slane %v797, %v994
        %v996 = vsel %vm898, %v995, %v991
        %v997 = vlaneseq
        %v998 = vshrl.u32 %v997, 7
        %v999 = vsub.s32 %v900, %v998
        %v1000 = vrot.slane %v798, %v999
        %v1001 = vsel %vm905, %v1000, %v996
        %v1002 = vlaneseq
        %v1003 = vshrl.u32 %v1002, 7
        %v1004 = vsub.s32 %v907, %v1003
        %v1005 = vrot.slane %v799, %v1004
        %v1006 = vsel %vm912, %v1005, %v1001
        %v1007 = vlaneseq
        %v1008 = vshrl.u32 %v1007, 7
        %v1009 = vsub.s32 %v914, %v1008
        %v1010 = vrot.slane %v800, %v1009
        %v1011 = vsel %vm919, %v1010, %v1006
        %v1012 = vlaneseq
        %v1013 = vshrl.u32 %v1012, 7
        %v1014 = vsub.s32 %v921, %v1013
        %v1015 = vrot.slane %v801, %v1014
        %v1016 = vsel %vm926, %v1015, %v1011
        %v1017 = vlaneseq
        %v1018 = vshrl.u32 %v1017, 7
        %v1019 = vsub.s32 %v928, %v1018
        %v1020 = vrot.slane %v802, %v1019
        %v1021 = vsel %vm933, %v1020, %v1016
        %v1022 = vlaneseq
        %v1023 = vshrl.u32 %v1022, 7
        %v1024 = vsub.s32 %v935, %v1023
        %v1025 = vrot.slane %v803, %v1024
        %v1026 = vsel %vm940, %v1025, %v1021
        %v1027 = vlaneseq
        %v1028 = vshrl.u32 %v1027, 7
        %v1029 = vsub.s32 %v942, %v1028
        %v1030 = vrot.slane %v804, %v1029
        %v1031 = vsel %vm947, %v1030, %v1026
        %v1032 = vlaneseq
        %v1033 = vshrl.u32 %v1032, 7
        %v1034 = vsub.s32 %v949, %v1033
        %v1035 = vrot.slane %v805, %v1034
        %v1036 = vsel %vm954, %v1035, %v1031
        %v1037 = vlaneseq
        %v1038 = vshrl.u32 %v1037, 7
        %v1039 = vsub.s32 %v956, %v1038
        %v1040 = vrot.slane %v806, %v1039
        %v1041 = vsel %vm961, %v1040, %v1036
        %vm1042 = vcmask 1041409
        %v1043 = vsel %vm1042, %v1041, %v962
        %v1045 = vsel %vm821, %v1043, -3.4028235e+38
        %vm1046 = vcmask 1041408
        %v1047 = vsel %vm1046, %v1045, -inf
        %1048 = vmax.xlane.f32.xlu0 %v1047
        %v1049 = vpop.xlane.xlu0 %1048
        %v1050 = vsub.f32 %v1045, %v1049
        %v1051 = vmul.f32 %v1050, 1.442695
        %v1052 = vpow.pop %v1051
        %v1053 = vsel %vm1046, %v1052, 0.0
        %1054 = vadd.xlane.f32.xlu0 %v1053
        %v1055 = vpop.xlane.xlu0 %1054
        %v1056 = vrcp.pop %v1055
        %v1057 = vmul.f32 %v1052, %v1056
        %1058 = vst [vmem:[%s267] sm:$0x3] %v1057
        %s1059 = sand.u32 %s150, 1
        %s1060 = scalar_lea.sflag [#allocation7], %s1059
        %s1061 = sand.u32 %s150, 1
        %s1062 = smul.addr %s1061, 2
        %s1063 = scalar_lea.vmem [#allocation10], %s1062
        // Predicated region
        $region49: #{tpu_custom_call.1} parent=39 // pred_check
          %p1064 = pneg %p160
        $region50: #{tpu_custom_call.1} parent=39 // pred_check_branch
          %1066 = sbr.rel (%p1064) target = $region52
        $region51: #{tpu_custom_call.1} parent=39 // pred_region
          %s1068 = ssub.s32 32, 32
          %1069 = vsyncadd %s1060, %s1068
          %s1070 = smul.addr %s32, 32
          %s1071 = scalar_lea.hbm %s6, %s1070
          %s1073 = sshll.u32 %s1063, 4
          %s1074 = int_to_ptr.vmem [resolvable:$true] %s1073
          %1076 = dma.vmem_to_hbm [thread:$0]  %s1074, 32, %s1071, %s1060
        $region52: #{tpu_custom_call.1} parent=39 // pred_fallthru
          _
      $region40: #{tpu_custom_call.1} parent=5 // pred_fallthru
        _
      %p1077 = scmp.le.s32.totalorder 2, %s27
      // Predicated region
      $region53: #{tpu_custom_call.1} parent=5 // pred_check
        %p1078 = pneg %p1077
      $region54: #{tpu_custom_call.1} parent=5 // pred_check_branch
        %1080 = sbr.rel (%p1078) target = $region56
      $region55: #{tpu_custom_call.1} parent=5 // pred_region
        %s1081 = ssub.s32 %s27, 2
        // Predicated region
        $region57: #{tpu_custom_call.1} parent=55 // pred_check
          %p1082 = pneg %p166
        $region58: #{tpu_custom_call.1} parent=55 // pred_check_branch
          %1084 = sbr.rel (%p1082) target = $region60
        $region59: #{tpu_custom_call.1} parent=55 // pred_region
          %s1085 = sand.u32 %s151, 1
          %s1086 = scalar_lea.sflag [#allocation7], %s1085
          %s1087 = sand.u32 %s151, 1
          %s1088 = smul.addr %s1087, 2
          %s1089 = scalar_lea.vmem [#allocation10], %s1088
          %1090 = dma.done %s1086, 32
        $region60: #{tpu_custom_call.1} parent=55 // pred_fallthru
          _
      $region56: #{tpu_custom_call.1} parent=5 // pred_fallthru
        _
    $region6: #{tpu_custom_call.1} parent=1 // loop_footer
      %s31 = sadd.s32 1, %s27
    $region7: #{tpu_custom_call.1} parent=1 // loop_footer_branch
      %26 = sbr.rel target = $region3
    $region8: #{tpu_custom_call.1} parent=1 // loop_exit
      _
    %1091 = vsyncpa [#allocation6], 1
    %s1092 = scalar_lea.sflag [#allocation6], 1
    %1093 = vsyncpa %s1092, 1
    %1094 = vsyncpa [#allocation9], 1
    %1095 = vsyncpa [#allocation7], 1
    %s1096 = scalar_lea.sflag [#allocation7], 1
    %1097 = vsyncpa %s1096, 1

</llo_original>
